<compile_context>
chip_gen: v5e
topology: v5e:2x2
jax: 0.10.0
libtpu: 0.0.40
codegen_flags: <defaults>
</compile_context>

<pallas_src>
import jax
import jax.numpy as jnp
from jax.experimental import pallas as pl
from jax.experimental.pallas import tpu as pltpu

NUM_CLASSES = 5
HIDDEN = 8
PADDED_CLASSES = 8      # classes padded 5 -> 8 (sentinel bias -1e30 on padded columns)
SLAB_ROWS = 24          # 1(w1) + 1(b1) + 8(w2) + 1(b2) + 8(w3) + 1(b3) = 20 -> pad to 24
NEG_BIG = -1e30         # padded class logits -> exp underflows to exactly 0 in f32


def mlp_kernel(x_ref, p_ref, out_ref):
    x = x_ref[...]                                   # (rows, 1)

    # ---- Layer 1: Linear(1 -> 8) + ReLU  (K=1 -> pure VPU broadcast multiply-add) ----
    w1 = p_ref[0:1, :]                               # (1, 8)
    b1 = p_ref[1:2, :]                               # (1, 8)
    h1 = jnp.maximum(x * w1 + b1, 0.0)               # (rows, 8)

    # ---- Layer 2: Linear(8 -> 8) + ReLU  (MXU) ----
    w2 = p_ref[2:10, :]                              # (8, 8)
    b2 = p_ref[10:11, :]                             # (1, 8)
    h2 = jnp.maximum(
        jnp.dot(h1, w2, preferred_element_type=jnp.float32) + b2, 0.0)

    # ---- Layer 3: Linear(8 -> 5), padded to 8 columns (zero weights, -1e30 bias) ----
    w3 = p_ref[11:19, :]                             # (8, 8); cols 5..7 are zeros
    b3 = p_ref[19:20, :]                             # (1, 8); cols 5..7 are -1e30
    logits = jnp.dot(h2, w3, preferred_element_type=jnp.float32) + b3

    # ---- Numerically-stable softmax over the 8-lane class axis (exact normalization) ----
    m = jnp.max(logits, axis=-1, keepdims=True)
    e = jnp.exp(logits - m)                          # padded lanes -> exactly 0
    s = jnp.sum(e, axis=-1, keepdims=True)
    out_ref[...] = (e / s).astype(out_ref.dtype)


def pack_params(params):
    """Pack (w1,b1,w2,b2,w3,b3) into one (24, 8) f32 slab. Build ONCE at init."""
    w1, b1, w2, b2, w3, b3 = params
    slab = jnp.zeros((SLAB_ROWS, PADDED_CLASSES), jnp.float32)
    slab = slab.at[0, :].set(w1.reshape(HIDDEN))                 # w1: (1,8)
    slab = slab.at[1, :].set(b1.reshape(HIDDEN))                 # b1
    slab = slab.at[2:10, :].set(w2)                              # w2: (8,8)
    slab = slab.at[10, :].set(b2.reshape(HIDDEN))                # b2
    slab = slab.at[11:19, :NUM_CLASSES].set(w3)                  # w3: (8,5); cols 5..7 stay 0
    b3_row = jnp.full((PADDED_CLASSES,), NEG_BIG, jnp.float32)
    b3_row = b3_row.at[:NUM_CLASSES].set(b3.reshape(NUM_CLASSES))
    slab = slab.at[19, :].set(b3_row)                            # b3 padded with -1e30
    return slab


def _choose_blocking(B):
    """Pick (row_block, B_pad): multiple-of-8 rows, big blocks, >=2 steps when large,
    padding waste <8 rows per step."""
    B8 = ((B + 7) // 8) * 8
    if B8 <= 1024:
        return B8, B8                                 # single step, minimal padding
    max_block = 8192
    n_steps = max(2, -(-B8 // max_block))             # >=2 so v7x can use both TCs
    row_block = ((-(-B8 // n_steps) + 7) // 8) * 8
    return row_block, row_block * n_steps


@jax.jit
def mlp_forward(x, slab):
    B = x.shape[0]
    row_block, B_pad = _choose_blocking(B)
    if B_pad != B:
        x = jnp.pad(x, ((0, B_pad - B), (0, 0)))

    out = pl.pallas_call(
        mlp_kernel,
        out_shape=jax.ShapeDtypeStruct((B_pad, PADDED_CLASSES), jnp.float32),
        grid=(B_pad // row_block,),
        in_specs=[
            pl.BlockSpec((row_block, 1), lambda i: (i, 0)),               # x rows
            pl.BlockSpec((SLAB_ROWS, PADDED_CLASSES), lambda i: (0, 0)),  # resident params
        ],
        out_specs=pl.BlockSpec((row_block, PADDED_CLASSES), lambda i: (i, 0)),
        compiler_params=pltpu.CompilerParams(
            dimension_semantics=("parallel",)),
    )(x, slab)

    return out[:B, :NUM_CLASSES]


def init_params(key):
    """Deterministic init mimicking PyTorch Linear default: U(-1/sqrt(fan_in), 1/sqrt(fan_in))."""
    def linear(k, fan_in, fan_out):
        kw, kb = jax.random.split(k)
        bound = 1.0 / jnp.sqrt(jnp.float32(fan_in))
        w = jax.random.uniform(kw, (fan_in, fan_out), jnp.float32, -bound, bound)
        b = jax.random.uniform(kb, (fan_out,), jnp.float32, -bound, bound)
        return w, b

    k1, k2, k3 = jax.random.split(key, 3)
    w1, b1 = linear(k1, 1, HIDDEN)
    w2, b2 = linear(k2, HIDDEN, HIDDEN)
    w3, b3 = linear(k3, HIDDEN, NUM_CLASSES)
    return w1, b1, w2, b2, w3, b3


def reference_forward(x, params):
    """Pure-JAX reference for sanity checking."""
    w1, b1, w2, b2, w3, b3 = params
    h1 = jnp.maximum(x @ w1 + b1, 0.0)
    h2 = jnp.maximum(h1 @ w2 + b2, 0.0)
    logits = h2 @ w3 + b3
    return jax.nn.softmax(logits, axis=-1)


if __name__ == "__main__":
    key = jax.random.PRNGKey(0)
    kx, kp = jax.random.split(key)

    B = 8                                            # small batch
    x = jax.random.normal(kx, (B, 1), jnp.float32)   # single scalar feature per sample
    params = init_params(kp)
    slab = pack_params(params)                       # built once, outside the forward path

    y = jax.block_until_ready(mlp_forward(x, slab))
    y_ref = reference_forward(x, params)

    assert y.shape == (B, NUM_CLASSES)
    assert jnp.allclose(jnp.sum(y, axis=-1), 1.0, atol=1e-4)     # exact divide -> tight
    assert jnp.allclose(y, y_ref, atol=1e-3, rtol=1e-3)

    print("KERNEL_OK")
</pallas_src>

<mosaic_0001>
module attributes {stable_mosaic.version = 11 : i64} {
  func.func @mlp_kernel(%arg0: i32, %arg1: memref<8x1xf32, #tpu.memory_space<vmem>>, %arg2: memref<24x8xf32, #tpu.memory_space<vmem>>, %arg3: memref<8x8xf32, #tpu.memory_space<vmem>>) attributes {dimension_semantics = [#tpu.dimension_semantics<parallel>], iteration_bounds = array<i64: 1>, scalar_prefetch = 0 : i64, scratch_operands = 0 : i64, tpu.core_type = #tpu.core_type<tc>, window_params = [{transform_indices = @transform_0, window_bounds = array<i64: 8, 1>}, {pipeline_mode = #tpu.pipeline_mode<synchronous>, transform_indices = @transform_1, window_bounds = array<i64: 24, 8>}, {transform_indices = @transform_2, window_bounds = array<i64: 8, 8>}]} {
    %c0 = arith.constant 0 : index
    %c0_0 = arith.constant 0 : index
    %0 = vector.load %arg1[%c0, %c0_0] : memref<8x1xf32, #tpu.memory_space<vmem>>, vector<8x1xf32>
    %c0_1 = arith.constant 0 : index
    %c0_2 = arith.constant 0 : index
    %1 = vector.load %arg2[%c0_1, %c0_2] : memref<24x8xf32, #tpu.memory_space<vmem>>, vector<1x8xf32>
    %c1 = arith.constant 1 : index
    %c0_3 = arith.constant 0 : index
    %2 = vector.load %arg2[%c1, %c0_3] : memref<24x8xf32, #tpu.memory_space<vmem>>, vector<1x8xf32>
    %3 = vector.broadcast %0 : vector<8x1xf32> to vector<8x8xf32>
    %4 = vector.broadcast %1 : vector<1x8xf32> to vector<8x8xf32>
    %5 = arith.mulf %3, %4 : vector<8x8xf32>
    %6 = vector.broadcast %2 : vector<1x8xf32> to vector<8x8xf32>
    %7 = arith.addf %5, %6 : vector<8x8xf32>
    %cst = arith.constant 0.000000e+00 : f32
    %8 = vector.broadcast %cst : f32 to vector<8x8xf32>
    %9 = arith.maximumf %7, %8 : vector<8x8xf32>
    %c2 = arith.constant 2 : index
    %c0_4 = arith.constant 0 : index
    %10 = vector.load %arg2[%c2, %c0_4] : memref<24x8xf32, #tpu.memory_space<vmem>>, vector<8x8xf32>
    %c10 = arith.constant 10 : index
    %c0_5 = arith.constant 0 : index
    %11 = vector.load %arg2[%c10, %c0_5] : memref<24x8xf32, #tpu.memory_space<vmem>>, vector<1x8xf32>
    %cst_6 = arith.constant dense<0.000000e+00> : vector<8x8xf32>
    %12 = tpu.matmul %9, %10, %cst_6 {dimension_numbers = #tpu.dot_dimension_numbers<[1], [0], [0], [1], [0, 0, 1, 1], [], []>} : vector<8x8xf32>, vector<8x8xf32>, vector<8x8xf32> -> vector<8x8xf32>
    %13 = vector.broadcast %11 : vector<1x8xf32> to vector<8x8xf32>
    %14 = arith.addf %12, %13 : vector<8x8xf32>
    %cst_7 = arith.constant 0.000000e+00 : f32
    %15 = vector.broadcast %cst_7 : f32 to vector<8x8xf32>
    %16 = arith.maximumf %14, %15 : vector<8x8xf32>
    %c11 = arith.constant 11 : index
    %c0_8 = arith.constant 0 : index
    %17 = vector.load %arg2[%c11, %c0_8] : memref<24x8xf32, #tpu.memory_space<vmem>>, vector<8x8xf32>
    %c19 = arith.constant 19 : index
    %c0_9 = arith.constant 0 : index
    %18 = vector.load %arg2[%c19, %c0_9] : memref<24x8xf32, #tpu.memory_space<vmem>>, vector<1x8xf32>
    %cst_10 = arith.constant dense<0.000000e+00> : vector<8x8xf32>
    %19 = tpu.matmul %16, %17, %cst_10 {dimension_numbers = #tpu.dot_dimension_numbers<[1], [0], [0], [1], [0, 0, 1, 1], [], []>} : vector<8x8xf32>, vector<8x8xf32>, vector<8x8xf32> -> vector<8x8xf32>
    %20 = vector.broadcast %18 : vector<1x8xf32> to vector<8x8xf32>
    %21 = arith.addf %19, %20 : vector<8x8xf32>
    %cst_11 = arith.constant dense<0xFF800000> : vector<8xf32>
    %22 = vector.multi_reduction <maximumf>, %21, %cst_11 [1] : vector<8x8xf32> to vector<8xf32>
    %23 = vector.shape_cast %22 : vector<8xf32> to vector<8x1xf32>
    %24 = vector.broadcast %23 : vector<8x1xf32> to vector<8x8xf32>
    %25 = arith.subf %21, %24 : vector<8x8xf32>
    %26 = math.exp %25 : vector<8x8xf32>
    %cst_12 = arith.constant dense<0.000000e+00> : vector<8xf32>
    %27 = vector.multi_reduction <add>, %26, %cst_12 [1] : vector<8x8xf32> to vector<8xf32>
    %28 = vector.shape_cast %27 : vector<8xf32> to vector<8x1xf32>
    %29 = vector.broadcast %28 : vector<8x1xf32> to vector<8x8xf32>
    %30 = arith.divf %26, %29 : vector<8x8xf32>
    %c0_13 = arith.constant 0 : index
    %c0_14 = arith.constant 0 : index
    %31 = vector.load %arg3[%c0_13, %c0_14] : memref<8x8xf32, #tpu.memory_space<vmem>>, vector<8x8xf32>
    tpu.vector_store %arg3[%c0_13, %c0_14], %30 {strides = array<i32>} : memref<8x8xf32, #tpu.memory_space<vmem>>, vector<8x8xf32>,
    return
  }
  func.func @transform_0(%arg0: i32) -> (i32, i32) {
    %c0_i32 = arith.constant 0 : i32
    %c0_i32_0 = arith.constant 0 : i32
    return %arg0, %c0_i32 : i32, i32
  }
  func.func @transform_1(%arg0: i32) -> (i32, i32) {
    %c0_i32 = arith.constant 0 : i32
    %c0_i32_0 = arith.constant 0 : i32
    %c0_i32_1 = arith.constant 0 : i32
    return %c0_i32, %c0_i32_0 : i32, i32
  }
  func.func @transform_2(%arg0: i32) -> (i32, i32) {
    %c0_i32 = arith.constant 0 : i32
    %c0_i32_0 = arith.constant 0 : i32
    return %arg0, %c0_i32 : i32, i32
  }
}

</mosaic_0001>

<llo_original>
// kernel: mlp_forward.1
$region0: #{mlp_forward.1}
  #allocation0 [shape = 'u32[]', space=smem, size = 0x4, offset = 0x4, fixed_abs, tag = 'smem constant byte address 0x4 - core index']
  #allocation1 [shape = 'u32[72,128]{1,0:T(1,128)}', space=vmem, size = 0x9000, scoped, tag = 'internal scratch']
  %s0 = inlined_call_operand.vmem [shape: f32[8,1], index: 0, kind: input, shape index: {}]
  %s1 = inlined_call_operand.vmem [shape: f32[24,8], index: 1, kind: input, shape index: {}]
  %s2 = inlined_call_operand.hbm [shape: f32[8,8], index: 2, kind: output, shape index: {}]
  %s3 = sld [smem:[#allocation0]]
  $region18: #{mlp_forward.1} parent=0
    _
  %s5 = ssub.s32 1, %s3
  %s6 = scalar_select 0, %s5, %s3
  $region1: #{mlp_forward.1} parent=0
    #allocation2 [shape = 'u8[4096]{0}', space=vmem, size = 0x1000, scoped, tag = 'output window, operand 0, single buffered']
    #allocation3 [shape = 's32[1]{0}', space=sflag, size = 0x4, scoped, tag = 'scoped memory for mlp_forward.1']
    %7 = vsyncpa [#allocation3], 0
    // Predicated region
    $region2: #{mlp_forward.1} parent=1 // pred_check
      _
    $region3: #{mlp_forward.1} parent=1 // pred_check_branch
      %9 = sbr.rel (0) target = $region5
    $region4: #{mlp_forward.1} parent=1 // pred_region
      _
    $region5: #{mlp_forward.1} parent=1 // pred_fallthru
      _
    // Predicated region
    $region6: #{mlp_forward.1} parent=1 // pred_check
      _
    $region7: #{mlp_forward.1} parent=1 // pred_check_branch
      %11 = sbr.rel (0) target = $region9
    $region8: #{mlp_forward.1} parent=1 // pred_region
      _
    $region9: #{mlp_forward.1} parent=1 // pred_fallthru
      _
    %v12 = vld [vmem:[%s0] sm:$0xff]
    %v13 = vld [vmem:[%s1] sm:$0x1]
    %v14 = vld [vmem:[%s1 + $0x1] sm:$0x1]
    %16 = vset.pattern.permute.xlu0 0
    %17 = vperm.xlu0 %16, %v12
    %v18 = vpop.permute.xlu0 %17
    %v20 = vperm.slane %v13, 0
    %v21 = vmul.f32 %v18, %v20
    %v22 = vperm.slane %v14, 0
    %v23 = vadd.f32 %v21, %v22
    %v24 = vmax.f32 %v23, 0.0
    %v25 = vld [vmem:[%s1 + $0x2] sm:$0xff]
    %v26 = vld [vmem:[%s1 + $0xa] sm:$0x1]
    %v27 = vperm.slane %v26, 0
    %vm28 = vcmask 64512
    %v30 = vsel %vm28, %v24, 0
    %32 = vmatpush.msra.mxu0 0.0
    %33 = vmatpush.msra.mxu0 0.0
    %34 = vmatpush.msra.mxu0 0.0
    %35 = vmatpush.msra.mxu0 0.0
    %36 = vmatpush.msra.mxu0 0.0
    %37 = vmatpush.msra.mxu0 0.0
    %38 = vmatpush.msra.mxu0 0.0
    %39 = vmatpush.msra.mxu0 0.0
    %40 = vmatpush.msra.mxu0 0.0
    %41 = vmatpush.msra.mxu0 0.0
    %42 = vmatpush.msra.mxu0 0.0
    %43 = vmatpush.msra.mxu0 0.0
    %44 = vmatpush.msra.mxu0 0.0
    %45 = vmatpush.msra.mxu0 0.0
    %46 = vmatpush.msra.mxu0 0.0
    %47 = vmatpush.msra.mxu0 %v25
    %48 = vmatmul.f32.gmra.mxu0 %v30
    %v49 = vpop.f32.mrf.mxu0
    %v50 = vadd.f32 %v27, %v49
    %51 = vdwg.mxu0
    %v52 = vmax.f32 %v50, 0.0
    %v53 = vld [vmem:[%s1 + $0xb] sm:$0xff]
    %v54 = vld [vmem:[%s1 + $0x13] sm:$0x1]
    %v55 = vperm.slane %v54, 0
    %v57 = vsel %vm28, %v52, 0
    %59 = vmatpush.msra.mxu0 0.0
    %60 = vmatpush.msra.mxu0 0.0
    %61 = vmatpush.msra.mxu0 0.0
    %62 = vmatpush.msra.mxu0 0.0
    %63 = vmatpush.msra.mxu0 0.0
    %64 = vmatpush.msra.mxu0 0.0
    %65 = vmatpush.msra.mxu0 0.0
    %66 = vmatpush.msra.mxu0 0.0
    %67 = vmatpush.msra.mxu0 0.0
    %68 = vmatpush.msra.mxu0 0.0
    %69 = vmatpush.msra.mxu0 0.0
    %70 = vmatpush.msra.mxu0 0.0
    %71 = vmatpush.msra.mxu0 0.0
    %72 = vmatpush.msra.mxu0 0.0
    %73 = vmatpush.msra.mxu0 0.0
    %74 = vmatpush.msra.mxu0 %v53
    %75 = vmatmul.f32.gmra.mxu0 %v57
    %v76 = vpop.f32.mrf.mxu0
    %v77 = vadd.f32 %v55, %v76
    %78 = vdwg.mxu0
    %v79 = vsel %vm28, %v77, -inf
    %80 = vmax.xlane.f32.xlu0 %v79
    %v81 = vpop.xlane.xlu0 %80
    %v82 = vsub.f32 %v77, %v81
    %v83 = vmul.f32 %v82, 1.442695
    %v84 = vpow.pop %v83
    %v85 = vsel %vm28, %v84, 0.0
    %86 = vadd.xlane.f32.xlu0 %v85
    %v87 = vpop.xlane.xlu0 %86
    %v88 = vrcp.pop %v87
    %v89 = vmul.f32 %v87, %v88
    %v90 = vsub.f32 1.0, %v89
    %v91 = vmul.f32 %v88, %v90
    %v92 = vadd.f32 %v88, %v91
    %vm93 = vweird.f32 %v87
    %vm94 = vweird.f32 %v88
    %vm95 = vmor %vm93, %vm94
    %v96 = vsel %vm95, %v88, %v92
    %v97 = vand.u32 2147483647, %v87
    %vm98 = vcmp.eq.f32.partialorder %v97, 8.507059e+37
    %v99 = vand.u32 %v87, 2147483648
    %v100 = vor.u32 1.1754944e-38, %v99
    %v101 = vsel %vm98, %v100, %v96
    %v102 = vmul.f32 %v84, %v101
    %103 = vst.msk [vmem:[#allocation2] sm:$0xff] %vm28, %v102
    // Predicated region
    $region10: #{mlp_forward.1} parent=1 // pred_check
      _
    $region11: #{mlp_forward.1} parent=1 // pred_check_branch
      %105 = sbr.rel (0) target = $region13
    $region12: #{mlp_forward.1} parent=1 // pred_region
      %107 = vsyncadd [#allocation3], 0
      %s109 = sshll.u32 [#allocation2], 4
      %s110 = int_to_ptr.vmem [resolvable:$true] %s109
      %s111 = sshll.u32 %s2, 4
      %s112 = int_to_ptr.hbm [resolvable:$true] %s111
      %114 = dma.vmem_to_hbm [thread:$0]  %s110, 128, %s112, [#allocation3]
    $region13: #{mlp_forward.1} parent=1 // pred_fallthru
      _
    // Predicated region
    $region14: #{mlp_forward.1} parent=1 // pred_check
      _
    $region15: #{mlp_forward.1} parent=1 // pred_check_branch
      %116 = sbr.rel (0) target = $region17
    $region16: #{mlp_forward.1} parent=1 // pred_region
      %118 = dma.done [#allocation3], 128
    $region17: #{mlp_forward.1} parent=1 // pred_fallthru
      _
    %119 = vsyncpa [#allocation3], 1

</llo_original>
